<compile_context>
chip_gen: v6e
topology: v6e:2x2x1
jax: 0.10.0
libtpu: 0.0.40
codegen_flags: <defaults>
</compile_context>

<pallas_src>
import jax
import jax.numpy as jnp
from jax import lax
from jax.experimental import pallas as pl
from jax.experimental.pallas import tpu as pltpu

# ----- small config consistent with Frozen.__init__ / forward -----
B      = 2     # batch
CIN    = 4     # model_args.img_input_channel
IMG    = 16    # image H = W
CF     = 32    # model_args.resnet_fc_dim (vision feature dim)
HID    = 32    # language_model.config.hidden_size
T_IMG  = 2     # model_args.img_token_num
SEQ    = 8     # text sequence length
VOCAB  = 64    # LM vocab size
KH = KW = 3    # conv kernel
STRIDE = 2     # conv1_t_stride = 2
HO = WO = (IMG + 2 - KH) // STRIDE + 1   # 8 (SAME padding via explicit pad)
NPIX   = HO * WO                         # 64 output pixels per image
KDIM   = KH * KW * CIN                   # 36 im2col contraction dim
KAUG   = KDIM + 1                        # +1 ones column (folded conv bias)
KPAD   = 40                              # contraction dim padded to multiple of 8
T_OUT  = T_IMG + SEQ                     # 10 total sequence length

# packed-constant slab layout (lane width 128; every section start 8-aligned)
SLAB_W = 128
CW_R0  = 0                 # conv weights (+bias row 36) : rows [0, 40)   cols [0,32)
FW_R0  = KPAD              # fc weights (pre / NPIX)     : rows [40, 72)  cols [0,64)
FB_R0  = FW_R0 + CF        # fc bias                     : row  72        cols [0,64)
PL_R0  = FB_R0 + 8         # segment pool 0/1 mask       : rows [80, 82)  cols [0,128)
SLAB_R = PL_R0 + 8         # 88 rows total


# ---------------------------------------------------------------------------
# Single fused kernel: conv(im2col) + ReLU + pool + fc + embedding + concat.
# No grid: one invocation, all operands VMEM-resident, heavy ops on the MXU,
# one full-block lane-dense output store.
# ---------------------------------------------------------------------------
def fused_kernel(patch_ref, hot2_ref, embbig_ref, wslab_ref, out_ref):
    # ---- conv as one im2col matmul; conv bias folded via the ones column ----
    conv_w = wslab_ref[CW_R0:CW_R0 + KPAD, 0:CF]                    # (40, 32)
    acc = jnp.maximum(
        jnp.dot(patch_ref[...], conv_w,
                preferred_element_type=jnp.float32), 0.0)           # (128, 32)

    # ---- per-image global average pool: 0/1 segment-mask matmul ----
    # (the 1/NPIX normalization is folded into fc_w in the wrapper)
    pool = wslab_ref[PL_R0:PL_R0 + B, 0:B * NPIX]                   # (2, 128)
    feats = jnp.dot(pool, acc, preferred_element_type=jnp.float32)  # (2, 32)

    # ---- fc head for ALL image tokens in one matmul ----
    fc_w = wslab_ref[FW_R0:FW_R0 + CF, 0:T_IMG * HID]               # (32, 64)
    fc_b = wslab_ref[FB_R0:FB_R0 + 1, 0:T_IMG * HID]                # (1, 64)
    vis = jnp.dot(feats, fc_w, preferred_element_type=jnp.float32) + fc_b   # (2, 64)

    # ---- token embedding: per-position block-diagonal one-hot matmul ----
    # produces text embeddings already lane-flattened as (B, SEQ*HID)
    txt = jnp.dot(hot2_ref[...], embbig_ref[...],
                  preferred_element_type=jnp.float32)               # (2, 256)

    # ---- concat([vision, text], dim=1) flattened: ONE full-block store ----
    out_ref[...] = jnp.concatenate([vis, txt], axis=1)              # (2, 320)


# ---------------------------------------------------------------------------
# Frozen.get_inputs_embeds — wrapper glue (pure layout plumbing, fused by XLA):
# NCHW->NHWC, SAME pad, stride-2 im2col, one-hot expansion, constant packing.
# ---------------------------------------------------------------------------
def frozen_get_inputs_embeds(input_img_nchw, input_ids, params):
    # im2col patches + ones column (folded conv bias) + pad K to 40
    img = jnp.transpose(input_img_nchw, (0, 2, 3, 1)).astype(jnp.float32)
    xpad = jnp.pad(img, ((0, 0), (1, 1), (1, 1), (0, 0)))
    taps = [xpad[:, kh:kh + 2 * HO:2, kw:kw + 2 * WO:2, :]          # (B, HO, WO, CIN)
            for kh in range(KH) for kw in range(KW)]
    patches = jnp.stack(taps, axis=3).reshape(B * NPIX, KDIM)       # (128, 36)
    patches_aug = jnp.concatenate(
        [patches, jnp.ones((B * NPIX, 1), jnp.float32),
         jnp.zeros((B * NPIX, KPAD - KAUG), jnp.float32)], axis=1)  # (128, 40)

    # one-hot over (seq, vocab) flattened -> (B, SEQ*VOCAB)
    hot2 = jax.nn.one_hot(input_ids, VOCAB,
                          dtype=jnp.float32).reshape(B, SEQ * VOCAB)   # (2, 512)
    # block-diagonal embedding table: emb repeated per sequence position
    emb_big = jnp.kron(jnp.eye(SEQ, dtype=jnp.float32),
                       params["emb"].astype(jnp.float32))            # (512, 256)

    # pack ALL small constants into one slab sliced in-kernel with static views
    conv_w_aug = jnp.concatenate(
        [params["conv_w"].reshape(KDIM, CF),
         params["conv_b"].reshape(1, CF),
         jnp.zeros((KPAD - KAUG, CF), jnp.float32)], axis=0)          # (40, 32)
    pool01 = (jnp.arange(B * NPIX, dtype=jnp.int32)[None, :] // NPIX ==
              jnp.arange(B, dtype=jnp.int32)[:, None]).astype(jnp.float32)  # (2, 128)

    def put(x, rows):
        return jnp.pad(x, ((0, rows - x.shape[0]), (0, SLAB_W - x.shape[1])))

    wslab = jnp.concatenate([
        put(conv_w_aug, KPAD),                             # rows [0, 40)
        put(params["fc_w"] * (1.0 / NPIX), CF),            # rows [40, 72)
        put(params["fc_b"].reshape(1, -1), 8),             # rows [72, 80)
        put(pool01, 8),                                    # rows [80, 88)
    ], axis=0)                                             # (88, 128)

    out2d = pl.pallas_call(
        fused_kernel,
        out_shape=jax.ShapeDtypeStruct((B, T_OUT * HID), jnp.float32),
        in_specs=[
            pl.BlockSpec(memory_space=pltpu.MemorySpace.VMEM),   # patches_aug
            pl.BlockSpec(memory_space=pltpu.MemorySpace.VMEM),   # hot2
            pl.BlockSpec(memory_space=pltpu.MemorySpace.VMEM),   # emb_big
            pl.BlockSpec(memory_space=pltpu.MemorySpace.VMEM),   # wslab
        ],
        out_specs=pl.BlockSpec(memory_space=pltpu.MemorySpace.VMEM),
    )(patches_aug, hot2, emb_big, wslab)

    # free row-major relabel of the lane-dense slab -> (B, T_IMG+SEQ, HID)
    return out2d.reshape(B, T_OUT, HID)


# ---------------------------------------------------------------------------
# plain-JAX reference (for the correctness check)
# ---------------------------------------------------------------------------
def reference(input_img_nchw, input_ids, params):
    x = jnp.transpose(input_img_nchw, (0, 2, 3, 1)).astype(jnp.float32)
    xpad = jnp.pad(x, ((0, 0), (1, 1), (1, 1), (0, 0)))
    conv = lax.conv_general_dilated(
        xpad, params["conv_w"], (STRIDE, STRIDE), "VALID",
        dimension_numbers=("NHWC", "HWIO", "NHWC"),
        precision=lax.Precision.HIGHEST)
    conv = jnp.maximum(conv + params["conv_b"].reshape(1, 1, 1, CF), 0.0)
    feats = conv.mean(axis=(1, 2))
    fc = jnp.dot(feats, params["fc_w"],
                 precision=lax.Precision.HIGHEST) + params["fc_b"].reshape(1, -1)
    vis = fc.reshape(B, T_IMG, HID)
    txt = params["emb"][input_ids]
    return jnp.concatenate([vis, txt], axis=1)


if __name__ == "__main__":
    key = jax.random.PRNGKey(0)
    k_img, k_ids, k_cw, k_cb, k_fw, k_fb, k_emb = jax.random.split(key, 7)

    input_img = jax.random.normal(k_img, (B, CIN, IMG, IMG), jnp.float32)  # NCHW
    input_ids = jax.random.randint(k_ids, (B, SEQ), 0, VOCAB, jnp.int32)

    params = {
        "conv_w": 0.1 * jax.random.normal(k_cw, (KH, KW, CIN, CF), jnp.float32),
        "conv_b": 0.1 * jax.random.normal(k_cb, (1, CF), jnp.float32),
        "fc_w":   0.05 * jax.random.normal(k_fw, (CF, HID * T_IMG), jnp.float32),
        "fc_b":   0.05 * jax.random.normal(k_fb, (1, HID * T_IMG), jnp.float32),
        "emb":    0.02 * jax.random.normal(k_emb, (VOCAB, HID), jnp.float32),
    }

    get_embeds = jax.jit(frozen_get_inputs_embeds)
    out = jax.block_until_ready(get_embeds(input_img, input_ids, params))

    ref = jax.block_until_ready(reference(input_img, input_ids, params))
    assert out.shape == (B, T_OUT, HID)
    assert jnp.allclose(out, ref, rtol=5e-3, atol=5e-4), "mismatch vs reference"

    print("KERNEL_OK")
</pallas_src>

<mosaic_0001>
module attributes {stable_mosaic.version = 11 : i64} {
  func.func @fused_kernel(%arg0: memref<128x40xf32, #tpu.memory_space<vmem>>, %arg1: memref<2x512xf32, #tpu.memory_space<vmem>>, %arg2: memref<512x256xf32, #tpu.memory_space<vmem>>, %arg3: memref<88x128xf32, #tpu.memory_space<vmem>>, %arg4: memref<2x320xf32, #tpu.memory_space<vmem>>) attributes {dimension_semantics = [], scalar_prefetch = 0 : i64, scratch_operands = 0 : i64, tpu.core_type = #tpu.core_type<tc>} {
    %c0 = arith.constant 0 : index
    %c0_0 = arith.constant 0 : index
    %0 = vector.load %arg3[%c0, %c0_0] : memref<88x128xf32, #tpu.memory_space<vmem>>, vector<40x32xf32>
    %c0_1 = arith.constant 0 : index
    %c0_2 = arith.constant 0 : index
    %1 = vector.load %arg0[%c0_1, %c0_2] : memref<128x40xf32, #tpu.memory_space<vmem>>, vector<128x40xf32>
    %cst = arith.constant dense<0.000000e+00> : vector<128x32xf32>
    %2 = tpu.matmul %1, %0, %cst {dimension_numbers = #tpu.dot_dimension_numbers<[1], [0], [0], [1], [0, 0, 1, 1], [], []>} : vector<128x40xf32>, vector<40x32xf32>, vector<128x32xf32> -> vector<128x32xf32>
    %cst_3 = arith.constant 0.000000e+00 : f32
    %3 = vector.broadcast %cst_3 : f32 to vector<128x32xf32>
    %4 = arith.maximumf %2, %3 : vector<128x32xf32>
    %c80 = arith.constant 80 : index
    %c0_4 = arith.constant 0 : index
    %5 = vector.load %arg3[%c80, %c0_4] : memref<88x128xf32, #tpu.memory_space<vmem>>, vector<2x128xf32>
    %cst_5 = arith.constant dense<0.000000e+00> : vector<2x32xf32>
    %6 = tpu.matmul %5, %4, %cst_5 {dimension_numbers = #tpu.dot_dimension_numbers<[1], [0], [0], [1], [0, 0, 1, 1], [], []>} : vector<2x128xf32>, vector<128x32xf32>, vector<2x32xf32> -> vector<2x32xf32>
    %c40 = arith.constant 40 : index
    %c0_6 = arith.constant 0 : index
    %7 = vector.load %arg3[%c40, %c0_6] : memref<88x128xf32, #tpu.memory_space<vmem>>, vector<32x64xf32>
    %c72 = arith.constant 72 : index
    %c0_7 = arith.constant 0 : index
    %8 = vector.load %arg3[%c72, %c0_7] : memref<88x128xf32, #tpu.memory_space<vmem>>, vector<1x64xf32>
    %cst_8 = arith.constant dense<0.000000e+00> : vector<2x64xf32>
    %9 = tpu.matmul %6, %7, %cst_8 {dimension_numbers = #tpu.dot_dimension_numbers<[1], [0], [0], [1], [0, 0, 1, 1], [], []>} : vector<2x32xf32>, vector<32x64xf32>, vector<2x64xf32> -> vector<2x64xf32>
    %10 = vector.broadcast %8 : vector<1x64xf32> to vector<2x64xf32>
    %11 = arith.addf %9, %10 : vector<2x64xf32>
    %c0_9 = arith.constant 0 : index
    %c0_10 = arith.constant 0 : index
    %12 = vector.load %arg1[%c0_9, %c0_10] : memref<2x512xf32, #tpu.memory_space<vmem>>, vector<2x512xf32>
    %c0_11 = arith.constant 0 : index
    %c0_12 = arith.constant 0 : index
    %13 = vector.load %arg2[%c0_11, %c0_12] : memref<512x256xf32, #tpu.memory_space<vmem>>, vector<512x256xf32>
    %cst_13 = arith.constant dense<0.000000e+00> : vector<2x256xf32>
    %14 = tpu.matmul %12, %13, %cst_13 {dimension_numbers = #tpu.dot_dimension_numbers<[1], [0], [0], [1], [0, 0, 1, 1], [], []>} : vector<2x512xf32>, vector<512x256xf32>, vector<2x256xf32> -> vector<2x256xf32>
    %15 = tpu.concatenate %11, %14 in 1 : vector<2x64xf32>, vector<2x256xf32> -> vector<2x320xf32>
    %c0_14 = arith.constant 0 : index
    %c0_15 = arith.constant 0 : index
    %16 = vector.load %arg4[%c0_14, %c0_15] : memref<2x320xf32, #tpu.memory_space<vmem>>, vector<2x320xf32>
    tpu.vector_store %arg4[%c0_14, %c0_15], %15 {strides = array<i32>} : memref<2x320xf32, #tpu.memory_space<vmem>>, vector<2x320xf32>,
    return
  }
}

</mosaic_0001>

<llo_original>
// kernel: frozen_get_inputs_embeds.1
$region0: #{frozen_get_inputs_embeds.1}
  #allocation0 [shape = 'u32[]', space=smem, size = 0x4, offset = 0x4, fixed_abs, tag = 'smem constant byte address 0x4 - core index']
  #allocation1 [shape = 'u32[144,128]{1,0:T(1,128)}', space=vmem, size = 0x12000, scoped, tag = 'internal scratch']
  %s0 = inlined_call_operand.vmem [shape: f32[128,40], index: 0, kind: input, shape index: {}]
  %s1 = inlined_call_operand.vmem [shape: f32[2,512], index: 1, kind: input, shape index: {}]
  %s2 = inlined_call_operand.vmem [shape: f32[512,256], index: 2, kind: input, shape index: {}]
  %s3 = inlined_call_operand.vmem [shape: f32[88,128], index: 3, kind: input, shape index: {}]
  %s4 = inlined_call_operand.vmem [shape: f32[2,320], index: 4, kind: output, shape index: {}]
  %s5 = sld [smem:[#allocation0]]
  $region26: #{frozen_get_inputs_embeds.1} parent=0
    _
  %s7 = ssub.s32 1, %s5
  %s8 = scalar_select 0, %s7, %s5
  // Predicated region
  $region2: #{frozen_get_inputs_embeds.1} parent=0 // pred_check
    _
  $region3: #{frozen_get_inputs_embeds.1} parent=0 // pred_check_branch
    %10 = sbr.rel (0) target = $region5
  $region4: #{frozen_get_inputs_embeds.1} parent=0 // pred_region
    _
  $region5: #{frozen_get_inputs_embeds.1} parent=0 // pred_fallthru
    _
  // Predicated region
  $region6: #{frozen_get_inputs_embeds.1} parent=0 // pred_check
    _
  $region7: #{frozen_get_inputs_embeds.1} parent=0 // pred_check_branch
    %12 = sbr.rel (0) target = $region9
  $region8: #{frozen_get_inputs_embeds.1} parent=0 // pred_region
    _
  $region9: #{frozen_get_inputs_embeds.1} parent=0 // pred_fallthru
    _
  // Predicated region
  $region10: #{frozen_get_inputs_embeds.1} parent=0 // pred_check
    _
  $region11: #{frozen_get_inputs_embeds.1} parent=0 // pred_check_branch
    %14 = sbr.rel (0) target = $region13
  $region12: #{frozen_get_inputs_embeds.1} parent=0 // pred_region
    _
  $region13: #{frozen_get_inputs_embeds.1} parent=0 // pred_fallthru
    _
  // Predicated region
  $region14: #{frozen_get_inputs_embeds.1} parent=0 // pred_check
    _
  $region15: #{frozen_get_inputs_embeds.1} parent=0 // pred_check_branch
    %16 = sbr.rel (0) target = $region17
  $region16: #{frozen_get_inputs_embeds.1} parent=0 // pred_region
    _
  $region17: #{frozen_get_inputs_embeds.1} parent=0 // pred_fallthru
    _
  %v17 = vld [vmem:[%s3] sm:$0xff]
  %v18 = vld [vmem:[%s3 + $0x8] sm:$0xff]
  %v19 = vld [vmem:[%s3 + $0x10] sm:$0xff]
  %v20 = vld [vmem:[%s3 + $0x18] sm:$0xff]
  %v21 = vld [vmem:[%s3 + $0x20] sm:$0xff]
  %v22 = vld [vmem:[%s0] sm:$0xff]
  %v23 = vld [vmem:[%s0 + $0x8] sm:$0xff]
  %v24 = vld [vmem:[%s0 + $0x10] sm:$0xff]
  %v25 = vld [vmem:[%s0 + $0x18] sm:$0xff]
  %v26 = vld [vmem:[%s0 + $0x20] sm:$0xff]
  %v27 = vld [vmem:[%s0 + $0x28] sm:$0xff]
  %v28 = vld [vmem:[%s0 + $0x30] sm:$0xff]
  %v29 = vld [vmem:[%s0 + $0x38] sm:$0xff]
  %v30 = vld [vmem:[%s0 + $0x40] sm:$0xff]
  %v31 = vld [vmem:[%s0 + $0x48] sm:$0xff]
  %v32 = vld [vmem:[%s0 + $0x50] sm:$0xff]
  %v33 = vld [vmem:[%s0 + $0x58] sm:$0xff]
  %v34 = vld [vmem:[%s0 + $0x60] sm:$0xff]
  %v35 = vld [vmem:[%s0 + $0x68] sm:$0xff]
  %v36 = vld [vmem:[%s0 + $0x70] sm:$0xff]
  %v37 = vld [vmem:[%s0 + $0x78] sm:$0xff]
  %vm38 = vcmask 326656
  %v40 = vsel %vm38, %v22, 0
  %v43 = vsel %vm38, %v23, 0
  %v46 = vsel %vm38, %v24, 0
  %v49 = vsel %vm38, %v25, 0
  %v52 = vsel %vm38, %v26, 0
  %v55 = vsel %vm38, %v27, 0
  %v58 = vsel %vm38, %v28, 0
  %v61 = vsel %vm38, %v29, 0
  %v64 = vsel %vm38, %v30, 0
  %v67 = vsel %vm38, %v31, 0
  %v70 = vsel %vm38, %v32, 0
  %v73 = vsel %vm38, %v33, 0
  %v76 = vsel %vm38, %v34, 0
  %v79 = vsel %vm38, %v35, 0
  %v82 = vsel %vm38, %v36, 0
  %v85 = vsel %vm38, %v37, 0
  %87 = vmatprep.subr.mxu0 0.0
  %88 = vmatpush1.msra.mxu0 0.0
  %89 = vmatprep.subr.mxu0 0.0
  %90 = vmatpush1.msra.mxu0 0.0
  %91 = vmatprep.subr.mxu0 0.0
  %92 = vmatpush1.msra.mxu0 0.0
  %93 = vmatprep.subr.mxu0 0.0
  %94 = vmatpush1.msra.mxu0 0.0
  %95 = vmatprep.subr.mxu0 0.0
  %96 = vmatpush1.msra.mxu0 0.0
  %97 = vmatprep.subr.mxu0 0.0
  %98 = vmatpush1.msra.mxu0 0.0
  %99 = vmatprep.subr.mxu0 0.0
  %100 = vmatpush1.msra.mxu0 0.0
  %101 = vmatprep.subr.mxu0 0.0
  %102 = vmatpush1.msra.mxu0 0.0
  %103 = vmatprep.subr.mxu0 0.0
  %104 = vmatpush1.msra.mxu0 0.0
  %105 = vmatprep.subr.mxu0 0.0
  %106 = vmatpush1.msra.mxu0 0.0
  %107 = vmatprep.subr.mxu0 0.0
  %108 = vmatpush1.msra.mxu0 0.0
  %109 = vmatprep.subr.mxu0 0.0
  %110 = vmatpush1.msra.mxu0 %v21
  %111 = vmatprep.subr.mxu0 0.0
  %112 = vmatpush1.msra.mxu0 %v20
  %113 = vmatprep.subr.mxu0 0.0
  %114 = vmatpush1.msra.mxu0 %v19
  %115 = vmatprep.subr.mxu0 0.0
  %116 = vmatpush1.msra.mxu0 %v18
  %117 = vmatprep.subr.mxu0 0.0
  %118 = vmatpush1.msra.mxu0 %v17
  %119 = vmatprep.subr.mxu0 0.0
  %120 = vmatpush2.msra.mxu0 0.0
  %121 = vmatprep.subr.mxu0 0.0
  %122 = vmatpush2.msra.mxu0 0.0
  %123 = vmatprep.subr.mxu0 0.0
  %124 = vmatpush2.msra.mxu0 0.0
  %125 = vmatprep.subr.mxu0 0.0
  %126 = vmatpush2.msra.mxu0 0.0
  %127 = vmatprep.subr.mxu0 0.0
  %128 = vmatpush2.msra.mxu0 0.0
  %129 = vmatprep.subr.mxu0 0.0
  %130 = vmatpush2.msra.mxu0 0.0
  %131 = vmatprep.subr.mxu0 0.0
  %132 = vmatpush2.msra.mxu0 0.0
  %133 = vmatprep.subr.mxu0 0.0
  %134 = vmatpush2.msra.mxu0 0.0
  %135 = vmatprep.subr.mxu0 0.0
  %136 = vmatpush2.msra.mxu0 0.0
  %137 = vmatprep.subr.mxu0 0.0
  %138 = vmatpush2.msra.mxu0 0.0
  %139 = vmatprep.subr.mxu0 0.0
  %140 = vmatpush2.msra.mxu0 0.0
  %141 = vmatprep.subr.mxu0 0.0
  %142 = vmatpush2.msra.mxu0 0.0
  %143 = vmatprep.subr.mxu0 0.0
  %144 = vmatpush2.msra.mxu0 0.0
  %145 = vmatprep.subr.mxu0 0.0
  %146 = vmatpush2.msra.mxu0 0.0
  %147 = vmatprep.subr.mxu0 0.0
  %148 = vmatpush2.msra.mxu0 0.0
  %149 = vmatprep.subr.mxu0 0.0
  %150 = vmatpush2.msra.mxu0 0.0
  %151 = vmatprep.mubr.f32.mxu0 0.0
  %152 = vmatmul.mubr.f32.gmra.mxu0 %v40
  %v153 = vpop.f32.mrf.mxu0
  %v154 = vadd.f32 0.0, %v153
  %v155 = vpop.f32.mrf.mxu0
  %156 = vmatprep.mubr.f32.mxu0 0.0
  %157 = vmatmul.mubr.f32.gmra.mxu0 %v43
  %v158 = vpop.f32.mrf.mxu0
  %v159 = vadd.f32 0.0, %v158
  %v160 = vpop.f32.mrf.mxu0
  %161 = vmatprep.mubr.f32.mxu0 0.0
  %162 = vmatmul.mubr.f32.gmra.mxu0 %v46
  %v163 = vpop.f32.mrf.mxu0
  %v164 = vadd.f32 0.0, %v163
  %v165 = vpop.f32.mrf.mxu0
  %166 = vmatprep.mubr.f32.mxu0 0.0
  %167 = vmatmul.mubr.f32.gmra.mxu0 %v49
  %v168 = vpop.f32.mrf.mxu0
  %v169 = vadd.f32 0.0, %v168
  %v170 = vpop.f32.mrf.mxu0
  %171 = vmatprep.mubr.f32.mxu0 0.0
  %172 = vmatmul.mubr.f32.gmra.mxu0 %v52
  %v173 = vpop.f32.mrf.mxu0
  %v174 = vadd.f32 0.0, %v173
  %v175 = vpop.f32.mrf.mxu0
  %176 = vmatprep.mubr.f32.mxu0 0.0
  %177 = vmatmul.mubr.f32.gmra.mxu0 %v55
  %v178 = vpop.f32.mrf.mxu0
  %v179 = vadd.f32 0.0, %v178
  %v180 = vpop.f32.mrf.mxu0
  %181 = vmatprep.mubr.f32.mxu0 0.0
  %182 = vmatmul.mubr.f32.gmra.mxu0 %v58
  %v183 = vpop.f32.mrf.mxu0
  %v184 = vadd.f32 0.0, %v183
  %v185 = vpop.f32.mrf.mxu0
  %186 = vmatprep.mubr.f32.mxu0 0.0
  %187 = vmatmul.mubr.f32.gmra.mxu0 %v61
  %v188 = vpop.f32.mrf.mxu0
  %v189 = vadd.f32 0.0, %v188
  %v190 = vpop.f32.mrf.mxu0
  %191 = vmatprep.mubr.f32.mxu0 0.0
  %192 = vmatmul.mubr.f32.gmra.mxu0 %v64
  %v193 = vpop.f32.mrf.mxu0
  %v194 = vadd.f32 0.0, %v193
  %v195 = vpop.f32.mrf.mxu0
  %196 = vmatprep.mubr.f32.mxu0 0.0
  %197 = vmatmul.mubr.f32.gmra.mxu0 %v67
  %v198 = vpop.f32.mrf.mxu0
  %v199 = vadd.f32 0.0, %v198
  %v200 = vpop.f32.mrf.mxu0
  %201 = vmatprep.mubr.f32.mxu0 0.0
  %202 = vmatmul.mubr.f32.gmra.mxu0 %v70
  %v203 = vpop.f32.mrf.mxu0
  %v204 = vadd.f32 0.0, %v203
  %v205 = vpop.f32.mrf.mxu0
  %206 = vmatprep.mubr.f32.mxu0 0.0
  %207 = vmatmul.mubr.f32.gmra.mxu0 %v73
  %v208 = vpop.f32.mrf.mxu0
  %v209 = vadd.f32 0.0, %v208
  %v210 = vpop.f32.mrf.mxu0
  %211 = vmatprep.mubr.f32.mxu0 0.0
  %212 = vmatmul.mubr.f32.gmra.mxu0 %v76
  %v213 = vpop.f32.mrf.mxu0
  %v214 = vadd.f32 0.0, %v213
  %v215 = vpop.f32.mrf.mxu0
  %216 = vmatprep.mubr.f32.mxu0 0.0
  %217 = vmatmul.mubr.f32.gmra.mxu0 %v79
  %v218 = vpop.f32.mrf.mxu0
  %v219 = vadd.f32 0.0, %v218
  %v220 = vpop.f32.mrf.mxu0
  %221 = vmatprep.mubr.f32.mxu0 0.0
  %222 = vmatmul.mubr.f32.gmra.mxu0 %v82
  %v223 = vpop.f32.mrf.mxu0
  %v224 = vadd.f32 0.0, %v223
  %v225 = vpop.f32.mrf.mxu0
  %226 = vmatprep.mubr.f32.mxu0 0.0
  %227 = vmatmul.mubr.f32.gmra.mxu0 %v85
  %v228 = vpop.f32.mrf.mxu0
  %v229 = vadd.f32 0.0, %v228
  %v230 = vpop.f32.mrf.mxu0
  %231 = vdwg.mxu0
  %v232 = vmax.f32 %v154, 0.0
  %v233 = vmax.f32 %v159, 0.0
  %v234 = vmax.f32 %v164, 0.0
  %v235 = vmax.f32 %v169, 0.0
  %v236 = vmax.f32 %v174, 0.0
  %v237 = vmax.f32 %v179, 0.0
  %v238 = vmax.f32 %v184, 0.0
  %v239 = vmax.f32 %v189, 0.0
  %v240 = vmax.f32 %v194, 0.0
  %v241 = vmax.f32 %v199, 0.0
  %v242 = vmax.f32 %v204, 0.0
  %v243 = vmax.f32 %v209, 0.0
  %v244 = vmax.f32 %v214, 0.0
  %v245 = vmax.f32 %v219, 0.0
  %v246 = vmax.f32 %v224, 0.0
  %v247 = vmax.f32 %v229, 0.0
  %v248 = vld [vmem:[%s3 + $0x50] sm:$0x3]
  %249 = vmatprep.subr.mxu0 0.0
  %250 = vmatpush1.msra.mxu0 %v247
  %251 = vmatprep.subr.mxu0 0.0
  %252 = vmatpush1.msra.mxu0 %v246
  %253 = vmatprep.subr.mxu0 0.0
  %254 = vmatpush1.msra.mxu0 %v245
  %255 = vmatprep.subr.mxu0 0.0
  %256 = vmatpush1.msra.mxu0 %v244
  %257 = vmatprep.subr.mxu0 0.0
  %258 = vmatpush1.msra.mxu0 %v243
  %259 = vmatprep.subr.mxu0 0.0
  %260 = vmatpush1.msra.mxu0 %v242
  %261 = vmatprep.subr.mxu0 0.0
  %262 = vmatpush1.msra.mxu0 %v241
  %263 = vmatprep.subr.mxu0 0.0
  %264 = vmatpush1.msra.mxu0 %v240
  %265 = vmatprep.subr.mxu0 0.0
  %266 = vmatpush1.msra.mxu0 %v239
  %267 = vmatprep.subr.mxu0 0.0
  %268 = vmatpush1.msra.mxu0 %v238
  %269 = vmatprep.subr.mxu0 0.0
  %270 = vmatpush1.msra.mxu0 %v237
  %271 = vmatprep.subr.mxu0 0.0
  %272 = vmatpush1.msra.mxu0 %v236
  %273 = vmatprep.subr.mxu0 0.0
  %274 = vmatpush1.msra.mxu0 %v235
  %275 = vmatprep.subr.mxu0 0.0
  %276 = vmatpush1.msra.mxu0 %v234
  %277 = vmatprep.subr.mxu0 0.0
  %278 = vmatpush1.msra.mxu0 %v233
  %279 = vmatprep.subr.mxu0 0.0
  %280 = vmatpush1.msra.mxu0 %v232
  %281 = vmatprep.subr.mxu0 0.0
  %282 = vmatpush2.msra.mxu0 0.0
  %283 = vmatprep.subr.mxu0 0.0
  %284 = vmatpush2.msra.mxu0 0.0
  %285 = vmatprep.subr.mxu0 0.0
  %286 = vmatpush2.msra.mxu0 0.0
  %287 = vmatprep.subr.mxu0 0.0
  %288 = vmatpush2.msra.mxu0 0.0
  %289 = vmatprep.subr.mxu0 0.0
  %290 = vmatpush2.msra.mxu0 0.0
  %291 = vmatprep.subr.mxu0 0.0
  %292 = vmatpush2.msra.mxu0 0.0
  %293 = vmatprep.subr.mxu0 0.0
  %294 = vmatpush2.msra.mxu0 0.0
  %295 = vmatprep.subr.mxu0 0.0
  %296 = vmatpush2.msra.mxu0 0.0
  %297 = vmatprep.subr.mxu0 0.0
  %298 = vmatpush2.msra.mxu0 0.0
  %299 = vmatprep.subr.mxu0 0.0
  %300 = vmatpush2.msra.mxu0 0.0
  %301 = vmatprep.subr.mxu0 0.0
  %302 = vmatpush2.msra.mxu0 0.0
  %303 = vmatprep.subr.mxu0 0.0
  %304 = vmatpush2.msra.mxu0 0.0
  %305 = vmatprep.subr.mxu0 0.0
  %306 = vmatpush2.msra.mxu0 0.0
  %307 = vmatprep.subr.mxu0 0.0
  %308 = vmatpush2.msra.mxu0 0.0
  %309 = vmatprep.subr.mxu0 0.0
  %310 = vmatpush2.msra.mxu0 0.0
  %311 = vmatprep.subr.mxu0 0.0
  %312 = vmatpush2.msra.mxu0 0.0
  %313 = vmatprep.mubr.f32.mxu0 0.0
  %314 = vmatmul.mubr.f32.gmra.mxu0 %v248
  %v315 = vpop.f32.mrf.mxu0
  %v316 = vadd.f32 0.0, %v315
  %v317 = vpop.f32.mrf.mxu0
  %318 = vdwg.mxu0
  %v319 = vld [vmem:[%s3 + $0x28] sm:$0xff]
  %v320 = vld [vmem:[%s3 + $0x30] sm:$0xff]
  %v321 = vld [vmem:[%s3 + $0x38] sm:$0xff]
  %v322 = vld [vmem:[%s3 + $0x40] sm:$0xff]
  %v323 = vld [vmem:[%s3 + $0x48] sm:$0x1]
  %v324 = vlaneseq
  %v325 = vshrl.u32 %v324, 7
  %v326 = vsub.s32 0, %v325
  %v327 = vrot.slane %v323, %v326
  %vm328 = vcmask 261120
  %v330 = vsel %vm328, %v316, 0
  %332 = vmatprep.subr.mxu0 0.0
  %333 = vmatpush1.msra.mxu0 0.0
  %334 = vmatprep.subr.mxu0 0.0
  %335 = vmatpush1.msra.mxu0 0.0
  %336 = vmatprep.subr.mxu0 0.0
  %337 = vmatpush1.msra.mxu0 0.0
  %338 = vmatprep.subr.mxu0 0.0
  %339 = vmatpush1.msra.mxu0 0.0
  %340 = vmatprep.subr.mxu0 0.0
  %341 = vmatpush1.msra.mxu0 0.0
  %342 = vmatprep.subr.mxu0 0.0
  %343 = vmatpush1.msra.mxu0 0.0
  %344 = vmatprep.subr.mxu0 0.0
  %345 = vmatpush1.msra.mxu0 0.0
  %346 = vmatprep.subr.mxu0 0.0
  %347 = vmatpush1.msra.mxu0 0.0
  %348 = vmatprep.subr.mxu0 0.0
  %349 = vmatpush1.msra.mxu0 0.0
  %350 = vmatprep.subr.mxu0 0.0
  %351 = vmatpush1.msra.mxu0 0.0
  %352 = vmatprep.subr.mxu0 0.0
  %353 = vmatpush1.msra.mxu0 0.0
  %354 = vmatprep.subr.mxu0 0.0
  %355 = vmatpush1.msra.mxu0 0.0
  %356 = vmatprep.subr.mxu0 0.0
  %357 = vmatpush1.msra.mxu0 %v322
  %358 = vmatprep.subr.mxu0 0.0
  %359 = vmatpush1.msra.mxu0 %v321
  %360 = vmatprep.subr.mxu0 0.0
  %361 = vmatpush1.msra.mxu0 %v320
  %362 = vmatprep.subr.mxu0 0.0
  %363 = vmatpush1.msra.mxu0 %v319
  %364 = vmatprep.subr.mxu0 0.0
  %365 = vmatpush2.msra.mxu0 0.0
  %366 = vmatprep.subr.mxu0 0.0
  %367 = vmatpush2.msra.mxu0 0.0
  %368 = vmatprep.subr.mxu0 0.0
  %369 = vmatpush2.msra.mxu0 0.0
  %370 = vmatprep.subr.mxu0 0.0
  %371 = vmatpush2.msra.mxu0 0.0
  %372 = vmatprep.subr.mxu0 0.0
  %373 = vmatpush2.msra.mxu0 0.0
  %374 = vmatprep.subr.mxu0 0.0
  %375 = vmatpush2.msra.mxu0 0.0
  %376 = vmatprep.subr.mxu0 0.0
  %377 = vmatpush2.msra.mxu0 0.0
  %378 = vmatprep.subr.mxu0 0.0
  %379 = vmatpush2.msra.mxu0 0.0
  %380 = vmatprep.subr.mxu0 0.0
  %381 = vmatpush2.msra.mxu0 0.0
  %382 = vmatprep.subr.mxu0 0.0
  %383 = vmatpush2.msra.mxu0 0.0
  %384 = vmatprep.subr.mxu0 0.0
  %385 = vmatpush2.msra.mxu0 0.0
  %386 = vmatprep.subr.mxu0 0.0
  %387 = vmatpush2.msra.mxu0 0.0
  %388 = vmatprep.subr.mxu0 0.0
  %389 = vmatpush2.msra.mxu0 0.0
  %390 = vmatprep.subr.mxu0 0.0
  %391 = vmatpush2.msra.mxu0 0.0
  %392 = vmatprep.subr.mxu0 0.0
  %393 = vmatpush2.msra.mxu0 0.0
  %394 = vmatprep.subr.mxu0 0.0
  %395 = vmatpush2.msra.mxu0 0.0
  %396 = vmatprep.mubr.f32.mxu0 0.0
  %397 = vmatmul.mubr.f32.gmra.mxu0 %v330
  %v398 = vpop.f32.mrf.mxu0
  %v399 = vadd.f32 %v327, %v398
  %v400 = vpop.f32.mrf.mxu0
  %401 = vdwg.mxu0
  %v402 = vld [vmem:[%s1] sm:$0xff]
  %v403 = vld [vmem:[%s2] sm:$0xff]
  %v404 = vld [vmem:[%s2 + $0x8] sm:$0xff]
  %v405 = vld [vmem:[%s2 + $0x10] sm:$0xff]
  %v406 = vld [vmem:[%s2 + $0x18] sm:$0xff]
  %v407 = vld [vmem:[%s2 + $0x20] sm:$0xff]
  %v408 = vld [vmem:[%s2 + $0x28] sm:$0xff]
  %v409 = vld [vmem:[%s2 + $0x30] sm:$0xff]
  %v410 = vld [vmem:[%s2 + $0x38] sm:$0xff]
  %v411 = vld [vmem:[%s2 + $0x40] sm:$0xff]
  %v412 = vld [vmem:[%s2 + $0x48] sm:$0xff]
  %v413 = vld [vmem:[%s2 + $0x50] sm:$0xff]
  %v414 = vld [vmem:[%s2 + $0x58] sm:$0xff]
  %v415 = vld [vmem:[%s2 + $0x60] sm:$0xff]
  %v416 = vld [vmem:[%s2 + $0x68] sm:$0xff]
  %v417 = vld [vmem:[%s2 + $0x70] sm:$0xff]
  %v418 = vld [vmem:[%s2 + $0x78] sm:$0xff]
  %v419 = vld [vmem:[%s2 + $0x80] sm:$0xff]
  %v420 = vld [vmem:[%s2 + $0x88] sm:$0xff]
  %v421 = vld [vmem:[%s2 + $0x90] sm:$0xff]
  %v422 = vld [vmem:[%s2 + $0x98] sm:$0xff]
  %v423 = vld [vmem:[%s2 + $0xa0] sm:$0xff]
  %v424 = vld [vmem:[%s2 + $0xa8] sm:$0xff]
  %v425 = vld [vmem:[%s2 + $0xb0] sm:$0xff]
  %v426 = vld [vmem:[%s2 + $0xb8] sm:$0xff]
  %v427 = vld [vmem:[%s2 + $0xc0] sm:$0xff]
  %v428 = vld [vmem:[%s2 + $0xc8] sm:$0xff]
  %v429 = vld [vmem:[%s2 + $0xd0] sm:$0xff]
  %v430 = vld [vmem:[%s2 + $0xd8] sm:$0xff]
  %v431 = vld [vmem:[%s2 + $0xe0] sm:$0xff]
  %v432 = vld [vmem:[%s2 + $0xe8] sm:$0xff]
  %v433 = vld [vmem:[%s2 + $0xf0] sm:$0xff]
  %v434 = vld [vmem:[%s2 + $0xf8] sm:$0xff]
  %v435 = vld [vmem:[%s2 + $0x100] sm:$0xff]
  %v436 = vld [vmem:[%s2 + $0x108] sm:$0xff]
  %v437 = vld [vmem:[%s2 + $0x110] sm:$0xff]
  %v438 = vld [vmem:[%s2 + $0x118] sm:$0xff]
  %v439 = vld [vmem:[%s2 + $0x120] sm:$0xff]
  %v440 = vld [vmem:[%s2 + $0x128] sm:$0xff]
  %v441 = vld [vmem:[%s2 + $0x130] sm:$0xff]
  %v442 = vld [vmem:[%s2 + $0x138] sm:$0xff]
  %v443 = vld [vmem:[%s2 + $0x140] sm:$0xff]
  %v444 = vld [vmem:[%s2 + $0x148] sm:$0xff]
  %v445 = vld [vmem:[%s2 + $0x150] sm:$0xff]
  %v446 = vld [vmem:[%s2 + $0x158] sm:$0xff]
  %v447 = vld [vmem:[%s2 + $0x160] sm:$0xff]
  %v448 = vld [vmem:[%s2 + $0x168] sm:$0xff]
  %v449 = vld [vmem:[%s2 + $0x170] sm:$0xff]
  %v450 = vld [vmem:[%s2 + $0x178] sm:$0xff]
  %v451 = vld [vmem:[%s2 + $0x180] sm:$0xff]
  %v452 = vld [vmem:[%s2 + $0x188] sm:$0xff]
  %v453 = vld [vmem:[%s2 + $0x190] sm:$0xff]
  %v454 = vld [vmem:[%s2 + $0x198] sm:$0xff]
  %v455 = vld [vmem:[%s2 + $0x1a0] sm:$0xff]
  %v456 = vld [vmem:[%s2 + $0x1a8] sm:$0xff]
  %v457 = vld [vmem:[%s2 + $0x1b0] sm:$0xff]
  %v458 = vld [vmem:[%s2 + $0x1b8] sm:$0xff]
  %v459 = vld [vmem:[%s2 + $0x1c0] sm:$0xff]
  %v460 = vld [vmem:[%s2 + $0x1c8] sm:$0xff]
  %v461 = vld [vmem:[%s2 + $0x1d0] sm:$0xff]
  %v462 = vld [vmem:[%s2 + $0x1d8] sm:$0xff]
  %v463 = vld [vmem:[%s2 + $0x1e0] sm:$0xff]
  %v464 = vld [vmem:[%s2 + $0x1e8] sm:$0xff]
  %v465 = vld [vmem:[%s2 + $0x1f0] sm:$0xff]
  %v466 = vld [vmem:[%s2 + $0x1f8] sm:$0xff]
  %v467 = vld [vmem:[%s2 + $0x200] sm:$0xff]
  %v468 = vld [vmem:[%s2 + $0x208] sm:$0xff]
  %v469 = vld [vmem:[%s2 + $0x210] sm:$0xff]
  %v470 = vld [vmem:[%s2 + $0x218] sm:$0xff]
  %v471 = vld [vmem:[%s2 + $0x220] sm:$0xff]
  %v472 = vld [vmem:[%s2 + $0x228] sm:$0xff]
  %v473 = vld [vmem:[%s2 + $0x230] sm:$0xff]
  %v474 = vld [vmem:[%s2 + $0x238] sm:$0xff]
  %v475 = vld [vmem:[%s2 + $0x240] sm:$0xff]
  %v476 = vld [vmem:[%s2 + $0x248] sm:$0xff]
  %v477 = vld [vmem:[%s2 + $0x250] sm:$0xff]
  %v478 = vld [vmem:[%s2 + $0x258] sm:$0xff]
  %v479 = vld [vmem:[%s2 + $0x260] sm:$0xff]
  %v480 = vld [vmem:[%s2 + $0x268] sm:$0xff]
  %v481 = vld [vmem:[%s2 + $0x270] sm:$0xff]
  %v482 = vld [vmem:[%s2 + $0x278] sm:$0xff]
  %v483 = vld [vmem:[%s2 + $0x280] sm:$0xff]
  %v484 = vld [vmem:[%s2 + $0x288] sm:$0xff]
  %v485 = vld [vmem:[%s2 + $0x290] sm:$0xff]
  %v486 = vld [vmem:[%s2 + $0x298] sm:$0xff]
  %v487 = vld [vmem:[%s2 + $0x2a0] sm:$0xff]
  %v488 = vld [vmem:[%s2 + $0x2a8] sm:$0xff]
  %v489 = vld [vmem:[%s2 + $0x2b0] sm:$0xff]
  %v490 = vld [vmem:[%s2 + $0x2b8] sm:$0xff]
  %v491 = vld [vmem:[%s2 + $0x2c0] sm:$0xff]
  %v492 = vld [vmem:[%s2 + $0x2c8] sm:$0xff]
  %v493 = vld [vmem:[%s2 + $0x2d0] sm:$0xff]
  %v494 = vld [vmem:[%s2 + $0x2d8] sm:$0xff]
  %v495 = vld [vmem:[%s2 + $0x2e0] sm:$0xff]
  %v496 = vld [vmem:[%s2 + $0x2e8] sm:$0xff]
  %v497 = vld [vmem:[%s2 + $0x2f0] sm:$0xff]
  %v498 = vld [vmem:[%s2 + $0x2f8] sm:$0xff]
  %v499 = vld [vmem:[%s2 + $0x300] sm:$0xff]
  %v500 = vld [vmem:[%s2 + $0x308] sm:$0xff]
  %v501 = vld [vmem:[%s2 + $0x310] sm:$0xff]
  %v502 = vld [vmem:[%s2 + $0x318] sm:$0xff]
  %v503 = vld [vmem:[%s2 + $0x320] sm:$0xff]
  %v504 = vld [vmem:[%s2 + $0x328] sm:$0xff]
  %v505 = vld [vmem:[%s2 + $0x330] sm:$0xff]
  %v506 = vld [vmem:[%s2 + $0x338] sm:$0xff]
  %v507 = vld [vmem:[%s2 + $0x340] sm:$0xff]
  %v508 = vld [vmem:[%s2 + $0x348] sm:$0xff]
  %v509 = vld [vmem:[%s2 + $0x350] sm:$0xff]
  %v510 = vld [vmem:[%s2 + $0x358] sm:$0xff]
  %v511 = vld [vmem:[%s2 + $0x360] sm:$0xff]
  %v512 = vld [vmem:[%s2 + $0x368] sm:$0xff]
  %v513 = vld [vmem:[%s2 + $0x370] sm:$0xff]
  %v514 = vld [vmem:[%s2 + $0x378] sm:$0xff]
  %v515 = vld [vmem:[%s2 + $0x380] sm:$0xff]
  %v516 = vld [vmem:[%s2 + $0x388] sm:$0xff]
  %v517 = vld [vmem:[%s2 + $0x390] sm:$0xff]
  %v518 = vld [vmem:[%s2 + $0x398] sm:$0xff]
  %v519 = vld [vmem:[%s2 + $0x3a0] sm:$0xff]
  %v520 = vld [vmem:[%s2 + $0x3a8] sm:$0xff]
  %v521 = vld [vmem:[%s2 + $0x3b0] sm:$0xff]
  %v522 = vld [vmem:[%s2 + $0x3b8] sm:$0xff]
  %v523 = vld [vmem:[%s2 + $0x3c0] sm:$0xff]
  %v524 = vld [vmem:[%s2 + $0x3c8] sm:$0xff]
  %v525 = vld [vmem:[%s2 + $0x3d0] sm:$0xff]
  %v526 = vld [vmem:[%s2 + $0x3d8] sm:$0xff]
  %v527 = vld [vmem:[%s2 + $0x3e0] sm:$0xff]
  %v528 = vld [vmem:[%s2 + $0x3e8] sm:$0xff]
  %v529 = vld [vmem:[%s2 + $0x3f0] sm:$0xff]
  %v530 = vld [vmem:[%s2 + $0x3f8] sm:$0xff]
  %v532 = vcombine.high %v402, %v402
  %v534 = vunpack.c.l.s4 1983009808
  %v535 = vunpack.c.0.s8 %v534
  %v536 = vlaneseq
  %v537 = vshrl.u32 %v536, 7
  %v538 = vsub.s32 %v535, %v537
  %v539 = vrot.slane %v402, %v538
  %v541 = vunpack.c.l.s4 1983009808
  %v542 = vunpack.c.0.s8 %v541
  %v543 = vlaneseq
  %v544 = vshrl.u32 %v543, 7
  %v545 = vsub.s32 %v542, %v544
  %v546 = vrot.slane %v532, %v545
  %v547 = vcombine.high %v539, %v539
  %v548 = vcombine.high %v546, %v546
  %553 = vmatprep.subr.mxu0 %v434
  %554 = vmatpush1.msra.mxu0 %v433
  %555 = vmatprep.subr.mxu0 %v432
  %556 = vmatpush1.msra.mxu0 %v431
  %557 = vmatprep.subr.mxu0 %v430
  %558 = vmatpush1.msra.mxu0 %v429
  %559 = vmatprep.subr.mxu0 %v428
  %560 = vmatpush1.msra.mxu0 %v427
  %561 = vmatprep.subr.mxu0 %v426
  %562 = vmatpush1.msra.mxu0 %v425
  %563 = vmatprep.subr.mxu0 %v424
  %564 = vmatpush1.msra.mxu0 %v423
  %565 = vmatprep.subr.mxu0 %v422
  %566 = vmatpush1.msra.mxu0 %v421
  %567 = vmatprep.subr.mxu0 %v420
  %568 = vmatpush1.msra.mxu0 %v419
  %569 = vmatprep.subr.mxu0 %v418
  %570 = vmatpush1.msra.mxu0 %v417
  %571 = vmatprep.subr.mxu0 %v416
  %572 = vmatpush1.msra.mxu0 %v415
  %573 = vmatprep.subr.mxu0 %v414
  %574 = vmatpush1.msra.mxu0 %v413
  %575 = vmatprep.subr.mxu0 %v412
  %576 = vmatpush1.msra.mxu0 %v411
  %577 = vmatprep.subr.mxu0 %v410
  %578 = vmatpush1.msra.mxu0 %v409
  %579 = vmatprep.subr.mxu0 %v408
  %580 = vmatpush1.msra.mxu0 %v407
  %581 = vmatprep.subr.mxu0 %v406
  %582 = vmatpush1.msra.mxu0 %v405
  %583 = vmatprep.subr.mxu0 %v404
  %584 = vmatpush1.msra.mxu0 %v403
  %585 = vmatprep.subr.mxu0 %v466
  %586 = vmatpush2.msra.mxu0 %v465
  %587 = vmatprep.subr.mxu0 %v464
  %588 = vmatpush2.msra.mxu0 %v463
  %589 = vmatprep.subr.mxu0 %v462
  %590 = vmatpush2.msra.mxu0 %v461
  %591 = vmatprep.subr.mxu0 %v460
  %592 = vmatpush2.msra.mxu0 %v459
  %593 = vmatprep.subr.mxu0 %v458
  %594 = vmatpush2.msra.mxu0 %v457
  %595 = vmatprep.subr.mxu0 %v456
  %596 = vmatpush2.msra.mxu0 %v455
  %597 = vmatprep.subr.mxu0 %v454
  %598 = vmatpush2.msra.mxu0 %v453
  %599 = vmatprep.subr.mxu0 %v452
  %600 = vmatpush2.msra.mxu0 %v451
  %601 = vmatprep.subr.mxu0 %v450
  %602 = vmatpush2.msra.mxu0 %v449
  %603 = vmatprep.subr.mxu0 %v448
  %604 = vmatpush2.msra.mxu0 %v447
  %605 = vmatprep.subr.mxu0 %v446
  %606 = vmatpush2.msra.mxu0 %v445
  %607 = vmatprep.subr.mxu0 %v444
  %608 = vmatpush2.msra.mxu0 %v443
  %609 = vmatprep.subr.mxu0 %v442
  %610 = vmatpush2.msra.mxu0 %v441
  %611 = vmatprep.subr.mxu0 %v440
  %612 = vmatpush2.msra.mxu0 %v439
  %613 = vmatprep.subr.mxu0 %v438
  %614 = vmatpush2.msra.mxu0 %v437
  %615 = vmatprep.subr.mxu0 %v436
  %616 = vmatpush2.msra.mxu0 %v435
  %617 = vmatprep.mubr.f32.mxu0 %v547
  %618 = vmatmul.mubr.f32.gmra.mxu0 %v539
  %v619 = vpop.f32.mrf.mxu0
  %v620 = vadd.f32 0.0, %v619
  %v621 = vpop.f32.mrf.mxu0
  %v622 = vadd.f32 0.0, %v621
  %623 = vdwg.mxu0
  %624 = vmatprep.subr.mxu0 %v498
  %625 = vmatpush1.msra.mxu0 %v497
  %626 = vmatprep.subr.mxu0 %v496
  %627 = vmatpush1.msra.mxu0 %v495
  %628 = vmatprep.subr.mxu0 %v494
  %629 = vmatpush1.msra.mxu0 %v493
  %630 = vmatprep.subr.mxu0 %v492
  %631 = vmatpush1.msra.mxu0 %v491
  %632 = vmatprep.subr.mxu0 %v490
  %633 = vmatpush1.msra.mxu0 %v489
  %634 = vmatprep.subr.mxu0 %v488
  %635 = vmatpush1.msra.mxu0 %v487
  %636 = vmatprep.subr.mxu0 %v486
  %637 = vmatpush1.msra.mxu0 %v485
  %638 = vmatprep.subr.mxu0 %v484
  %639 = vmatpush1.msra.mxu0 %v483
  %640 = vmatprep.subr.mxu0 %v482
  %641 = vmatpush1.msra.mxu0 %v481
  %642 = vmatprep.subr.mxu0 %v480
  %643 = vmatpush1.msra.mxu0 %v479
  %644 = vmatprep.subr.mxu0 %v478
  %645 = vmatpush1.msra.mxu0 %v477
  %646 = vmatprep.subr.mxu0 %v476
  %647 = vmatpush1.msra.mxu0 %v475
  %648 = vmatprep.subr.mxu0 %v474
  %649 = vmatpush1.msra.mxu0 %v473
  %650 = vmatprep.subr.mxu0 %v472
  %651 = vmatpush1.msra.mxu0 %v471
  %652 = vmatprep.subr.mxu0 %v470
  %653 = vmatpush1.msra.mxu0 %v469
  %654 = vmatprep.subr.mxu0 %v468
  %655 = vmatpush1.msra.mxu0 %v467
  %656 = vmatprep.subr.mxu0 %v530
  %657 = vmatpush2.msra.mxu0 %v529
  %658 = vmatprep.subr.mxu0 %v528
  %659 = vmatpush2.msra.mxu0 %v527
  %660 = vmatprep.subr.mxu0 %v526
  %661 = vmatpush2.msra.mxu0 %v525
  %662 = vmatprep.subr.mxu0 %v524
  %663 = vmatpush2.msra.mxu0 %v523
  %664 = vmatprep.subr.mxu0 %v522
  %665 = vmatpush2.msra.mxu0 %v521
  %666 = vmatprep.subr.mxu0 %v520
  %667 = vmatpush2.msra.mxu0 %v519
  %668 = vmatprep.subr.mxu0 %v518
  %669 = vmatpush2.msra.mxu0 %v517
  %670 = vmatprep.subr.mxu0 %v516
  %671 = vmatpush2.msra.mxu0 %v515
  %672 = vmatprep.subr.mxu0 %v514
  %673 = vmatpush2.msra.mxu0 %v513
  %674 = vmatprep.subr.mxu0 %v512
  %675 = vmatpush2.msra.mxu0 %v511
  %676 = vmatprep.subr.mxu0 %v510
  %677 = vmatpush2.msra.mxu0 %v509
  %678 = vmatprep.subr.mxu0 %v508
  %679 = vmatpush2.msra.mxu0 %v507
  %680 = vmatprep.subr.mxu0 %v506
  %681 = vmatpush2.msra.mxu0 %v505
  %682 = vmatprep.subr.mxu0 %v504
  %683 = vmatpush2.msra.mxu0 %v503
  %684 = vmatprep.subr.mxu0 %v502
  %685 = vmatpush2.msra.mxu0 %v501
  %686 = vmatprep.subr.mxu0 %v500
  %687 = vmatpush2.msra.mxu0 %v499
  %688 = vmatprep.mubr.f32.mxu0 %v548
  %689 = vmatmul.mubr.f32.gmra.mxu0 %v546
  %v690 = vpop.f32.mrf.mxu0
  %v691 = vadd.f32 %v620, %v690
  %v692 = vpop.f32.mrf.mxu0
  %v693 = vadd.f32 %v622, %v692
  %694 = vdwg.mxu0
  %697 = vrot.lane.b32.xlu0 %v691, 64
  %v698 = vpop.permute.xlu0 %697
  %699 = vrot.lane.b32.xlu0 %v693, 64
  %v700 = vpop.permute.xlu0 %699
  %vm701 = vcmask 523264
  %v702 = vsel %vm701, %v698, %v700
  %v704 = vsel %vm701, %v399, %v698
  %v706 = vcombine.low %v704, %v702
  %v708 = vunpack.c.l.s4 1983009808
  %v709 = vunpack.c.0.s8 %v708
  %v710 = vlaneseq
  %v711 = vshrl.u32 %v710, 7
  %v712 = vsub.s32 %v709, %v711
  %v713 = vrot.slane %v706, %v712
  %v715 = vunpack.c.l.s4 1983009808
  %v716 = vunpack.c.0.s8 %v715
  %v717 = vlaneseq
  %v718 = vshrl.u32 %v717, 7
  %v719 = vsub.s32 %v716, %v718
  %v720 = vrot.slane %v700, %v719
  %v721 = vcombine.low %v713, %v720
  %vm723 = vcmask 1041408
  %vm724 = vcmask 1043458
  %vm725 = vmor %vm724, %vm723
  %vm726 = vcmask 521220
  %vm727 = vmor %vm726, %vm725
  %728 = vst.msk [vmem:[%s4] sm:$0x3f] %vm727, %v721
  // Predicated region
  $region18: #{frozen_get_inputs_embeds.1} parent=0 // pred_check
    _
  $region19: #{frozen_get_inputs_embeds.1} parent=0 // pred_check_branch
    %730 = sbr.rel (0) target = $region21
  $region20: #{frozen_get_inputs_embeds.1} parent=0 // pred_region
    _
  $region21: #{frozen_get_inputs_embeds.1} parent=0 // pred_fallthru
    _
  // Predicated region
  $region22: #{frozen_get_inputs_embeds.1} parent=0 // pred_check
    _
  $region23: #{frozen_get_inputs_embeds.1} parent=0 // pred_check_branch
    %732 = sbr.rel (0) target = $region25
  $region24: #{frozen_get_inputs_embeds.1} parent=0 // pred_region
    _
  $region25: #{frozen_get_inputs_embeds.1} parent=0 // pred_fallthru
    _

</llo_original>
